<compile_context>
chip_gen: v5e
topology: v5e:2x2
jax: 0.10.0
libtpu: 0.0.40
codegen_flags: <defaults>
</compile_context>

<pallas_src>
import jax
import jax.numpy as jnp
from jax import lax
from jax.experimental import pallas as pl
from jax.experimental.pallas import tpu as pltpu

NEG_SLOPE = 0.2
BN_EPS = 1e-5
LANE = 128
SUBLANE = 8


def _leaky(x):
    # max(x, 0.2*x) == LeakyReLU(0.2) for slope < 1; 2 VPU ops instead of 3.
    return jnp.maximum(x, NEG_SLOPE * x)


def _pad_up(v, m):
    return -(-v // m) * m


def _full_spec(shape):
    # Whole-array block, resident across the grid.
    return pl.BlockSpec(shape, lambda *_: (0,) * len(shape))


def _vmem_capacity_bytes():
    try:
        info = pltpu.get_tpu_info()
        for attr in ("vmem_capacity_bytes", "vmem_bytes", "vmem_size_bytes"):
            v = getattr(info, attr, None)
            if v:
                return int(v)
    except Exception:
        pass
    return 64 * 1024 * 1024  # conservative (v7x per-core size)


def _num_tensorcores():
    try:
        info = pltpu.get_tpu_info()
        for attr in ("num_cores", "core_count", "num_tensorcores", "tensorcore_count"):
            v = getattr(info, attr, None)
            if v:
                return int(v)
    except Exception:
        pass
    try:
        v = getattr(jax.devices()[0], "num_cores", None)
        if v:
            return int(v)
    except Exception:
        pass
    return 2  # extra grid axis is harmless on single-TC parts


# ------------------------- Fused single-pass kernel --------------------------
# grid = (phase, tile); x and the output row stay resident in VMEM.
#   phase 0: accumulate BN sums/sum-of-squares (MXU dot with a ones column);
#            on the last tile fold BN into per-channel scale/offset (ab scratch).
#   phase 1: recompute y1/z from resident x, apply folded BN + leaky + final conv.
def _make_fused_kernel(tm, n_tiles, inv_m):
    def kernel(x_ref, w1t_ref, b1_ref, w2t_ref, gamma_ref, beta_ref, w3t_ref,
               ones_ref, corr_ref, o_ref, stats_ref, ab_ref):
        phase = pl.program_id(0)
        tile = pl.program_id(1)
        col0 = pl.multiple_of(tile * tm, LANE)

        x = x_ref[:, pl.ds(col0, tm)]                                  # (c_in, tm)
        y1 = _leaky(jnp.dot(w1t_ref[...], x,
                            preferred_element_type=jnp.float32) + b1_ref[...])
        z = jnp.dot(w2t_ref[...], y1,
                    preferred_element_type=jnp.float32)                # (c_mid, tm)

        @pl.when(phase == 0)
        def _():
            @pl.when(tile == 0)
            def _():
                stats_ref[...] = jnp.zeros_like(stats_ref)

            ones = ones_ref[...]                                       # (tm, 8)
            s = jnp.dot(z, ones, preferred_element_type=jnp.float32)[:, 0:1]
            sq = jnp.dot(z * z, ones, preferred_element_type=jnp.float32)[:, 0:1]
            stats_ref[:, 0:1] = stats_ref[:, 0:1] + s
            stats_ref[:, 1:2] = stats_ref[:, 1:2] + sq

            @pl.when(tile == n_tiles - 1)
            def _():
                # Remove the padded columns' (precomputed) contribution, fold BN.
                ssum = stats_ref[:, 0:1] - corr_ref[:, 0:1]
                ssq = stats_ref[:, 1:2] - corr_ref[:, 1:2]
                mean = ssum * inv_m
                var = ssq * inv_m - mean * mean                        # biased variance
                a = gamma_ref[...] * lax.rsqrt(var + BN_EPS)
                ab_ref[:, 0:1] = a
                ab_ref[:, 1:2] = beta_ref[...] - mean * a

        @pl.when(phase == 1)
        def _():
            y2 = _leaky(z * ab_ref[:, 0:1] + ab_ref[:, 1:2])
            o = jnp.dot(w3t_ref[...], y2,
                        preferred_element_type=jnp.float32)            # (8, tm)
            o_ref[:, pl.ds(col0, tm)] = o[0:1, :]

    return kernel


# --------------------------- Two-pass kernels --------------------------------
def _stats_kernel(x_ref, w1t_ref, b1_ref, w2t_ref, ones_ref, stats_ref):
    @pl.when(pl.program_id(1) == 0)
    def _():
        stats_ref[...] = jnp.zeros_like(stats_ref)

    y1 = _leaky(jnp.dot(w1t_ref[...], x_ref[...],
                        preferred_element_type=jnp.float32) + b1_ref[...])
    z = jnp.dot(w2t_ref[...], y1, preferred_element_type=jnp.float32)  # (c_mid, tm)
    ones = ones_ref[...]                                               # (tm, 8)
    s = jnp.dot(z, ones, preferred_element_type=jnp.float32)[:, 0:1]
    sq = jnp.dot(z * z, ones, preferred_element_type=jnp.float32)[:, 0:1]
    stats_ref[:, 0:1] = stats_ref[:, 0:1] + s
    stats_ref[:, 1:2] = stats_ref[:, 1:2] + sq


def _apply_kernel(x_ref, w1t_ref, b1_ref, w2t_ref, ab_ref, w3t_ref, o_ref):
    y1 = _leaky(jnp.dot(w1t_ref[...], x_ref[...],
                        preferred_element_type=jnp.float32) + b1_ref[...])
    z = jnp.dot(w2t_ref[...], y1, preferred_element_type=jnp.float32)
    y2 = _leaky(z * ab_ref[:, 0:1] + ab_ref[:, 1:2])                   # folded BN
    o = jnp.dot(w3t_ref[...], y2, preferred_element_type=jnp.float32)  # (8, tm)
    o_ref[...] = o[0:1, :]


# ------------------------------ Wrapper --------------------------------------
def pixel_discriminator(x_nchw, params, force_fused=None):
    w1, b1, w2, gamma, beta, w3 = (
        params["w1"], params["b1"], params["w2"],
        params["gamma"], params["beta"], params["w3"],
    )
    n, c_in, h, w = x_nchw.shape
    ndf = w1.shape[1]
    c_mid = w2.shape[1]                       # 2 * ndf
    m = n * h * w

    # Channels-first: (C, M) with M on lanes.
    x = jnp.transpose(x_nchw, (1, 0, 2, 3)).reshape(c_in, m).astype(jnp.float32)

    w1t = jnp.transpose(w1).astype(jnp.float32)          # (ndf, c_in)
    b1c = jnp.transpose(b1).astype(jnp.float32)          # (ndf, 1)
    w2t = jnp.transpose(w2).astype(jnp.float32)          # (c_mid, ndf)
    gamma_c = jnp.transpose(gamma).astype(jnp.float32)   # (c_mid, 1)
    beta_c = jnp.transpose(beta).astype(jnp.float32)     # (c_mid, 1)
    # w3^T padded to 8 sublanes: final conv is a plain (8, c_mid) @ (c_mid, tm) matmul.
    w3t = jnp.zeros((SUBLANE, c_mid), jnp.float32).at[0].set(
        w3[:, 0].astype(jnp.float32))

    # ------------------------- tiling / VMEM plan ----------------------------
    cap = _vmem_capacity_bytes()

    def sub(c):
        return max(_pad_up(c, SUBLANE), SUBLANE)

    # f32 bytes per output column resident in VMEM at one time (blocks double-buffered,
    # activation temps, lane-padded ones column, slack).
    per_col = 4 * (2 * sub(c_in) + 2 * SUBLANE + sub(ndf) + 2 * sub(c_mid)
                   + LANE + SUBLANE)
    budget = cap // 2
    tm_cap = 8192 if cap >= (96 << 20) else 4096         # v5e/v6e vs v7x-sized VMEM
    tm = max(LANE, min(tm_cap, (budget // per_col) // LANE * LANE))
    tm = min(tm, _pad_up(m, LANE))
    n_tiles = _pad_up(m, tm) // tm

    n_splits = max(1, min(_num_tensorcores(), n_tiles))
    tiles_per_split = -(-n_tiles // n_splits)
    n_tiles = n_splits * tiles_per_split
    m_pad = n_tiles * tm
    pad = m_pad - m
    if pad:
        x = jnp.pad(x, ((0, 0), (0, pad)))

    ones = jnp.ones((tm, SUBLANE), jnp.float32)

    # Padded (zero) x columns all produce the same constant z column z_pad; subtract
    # their exact contribution from the BN statistics (no in-kernel masking needed).
    z_pad = w2t @ _leaky(b1c)                                          # (c_mid, 1)
    corr = jnp.concatenate([pad * z_pad, pad * z_pad * z_pad], axis=1)  # (c_mid, 2)

    vmem_need = per_col * tm + (2 << 20)
    vmem_limit = int(min(max(32 << 20, 2 * vmem_need), cap, 128 << 20))
    resident = 4 * (sub(c_in) + SUBLANE) * m_pad          # x + output row kept in VMEM
    use_fused = (resident + vmem_need <= budget) if force_fused is None else bool(force_fused)

    if use_fused:
        # -------- single pass: x resident, phase-0 stats, phase-1 apply ------
        vmem_limit_f = int(min(max(32 << 20, 2 * (vmem_need + resident)), cap, 128 << 20))
        out_row = pl.pallas_call(
            _make_fused_kernel(tm, n_tiles, 1.0 / m),
            out_shape=jax.ShapeDtypeStruct((1, m_pad), jnp.float32),
            grid_spec=pltpu.PrefetchScalarGridSpec(
                num_scalar_prefetch=0,
                grid=(2, n_tiles),
                in_specs=[
                    _full_spec((c_in, m_pad)),            # x: one DMA, stays resident
                    _full_spec((ndf, c_in)),
                    _full_spec((ndf, 1)),
                    _full_spec((c_mid, ndf)),
                    _full_spec((c_mid, 1)),               # gamma
                    _full_spec((c_mid, 1)),               # beta
                    _full_spec((SUBLANE, c_mid)),         # w3^T (row 0 real)
                    _full_spec((tm, SUBLANE)),            # ones column for MXU sums
                    _full_spec((c_mid, 2)),               # padded-column correction
                ],
                out_specs=pl.BlockSpec((1, m_pad), lambda p, i: (0, 0)),
                scratch_shapes=[pltpu.VMEM((c_mid, 2), jnp.float32),   # stats
                                pltpu.VMEM((c_mid, 2), jnp.float32)],  # folded BN (a,b)
            ),
            compiler_params=pltpu.CompilerParams(
                dimension_semantics=("arbitrary", "arbitrary"),
                vmem_limit_bytes=vmem_limit_f,
            ),
        )(x, w1t, b1c, w2t, gamma_c, beta_c, w3t, ones, corr)
    else:
        # -------- pass 1: BN statistics only (z never written to HBM) --------
        stats_parts = pl.pallas_call(
            _stats_kernel,
            out_shape=jax.ShapeDtypeStruct((n_splits, c_mid, 2), jnp.float32),
            grid_spec=pltpu.PrefetchScalarGridSpec(
                num_scalar_prefetch=0,
                grid=(n_splits, tiles_per_split),
                in_specs=[
                    pl.BlockSpec((c_in, tm),
                                 lambda c, i: (0, c * tiles_per_split + i)),
                    _full_spec((ndf, c_in)),
                    _full_spec((ndf, 1)),
                    _full_spec((c_mid, ndf)),
                    _full_spec((tm, SUBLANE)),
                ],
                out_specs=pl.BlockSpec((None, c_mid, 2), lambda c, i: (c, 0, 0)),
            ),
            compiler_params=pltpu.CompilerParams(
                dimension_semantics=("parallel", "arbitrary"),
                vmem_limit_bytes=vmem_limit,
            ),
        )(x, w1t, b1c, w2t, ones)

        # ---- fold BN into per-channel scale/offset (tiny XLA op) ------------
        stats = jnp.sum(stats_parts, axis=0) - corr        # (c_mid, 2)
        mean = stats[:, 0:1] / m
        var = stats[:, 1:2] / m - mean * mean              # biased (training-mode) var
        a = gamma_c * lax.rsqrt(var + BN_EPS)
        b = beta_c - mean * a
        ab = jnp.concatenate([a, b], axis=1)               # (c_mid, 2)

        # -------- pass 2: recompute + folded BN + leaky + final conv ---------
        out_row = pl.pallas_call(
            _apply_kernel,
            out_shape=jax.ShapeDtypeStruct((1, m_pad), jnp.float32),
            grid_spec=pltpu.PrefetchScalarGridSpec(
                num_scalar_prefetch=0,
                grid=(n_tiles,),
                in_specs=[
                    pl.BlockSpec((c_in, tm), lambda i: (0, i)),
                    _full_spec((ndf, c_in)),
                    _full_spec((ndf, 1)),
                    _full_spec((c_mid, ndf)),
                    _full_spec((c_mid, 2)),
                    _full_spec((SUBLANE, c_mid)),
                ],
                out_specs=pl.BlockSpec((1, tm), lambda i: (0, i)),
            ),
            compiler_params=pltpu.CompilerParams(
                dimension_semantics=("parallel",),
                vmem_limit_bytes=vmem_limit,
            ),
        )(x, w1t, b1c, w2t, ab, w3t)

    out = out_row.reshape(m_pad)[:m].reshape(n, h, w)
    return out[:, None, :, :]                              # (N, 1, H, W)


# ------------------------- Pure-JAX reference --------------------------------
def pixel_discriminator_ref(x_nchw, params):
    w1, b1, w2, gamma, beta, w3 = (
        params["w1"], params["b1"], params["w2"],
        params["gamma"], params["beta"], params["w3"],
    )
    n, c_in, h, w = x_nchw.shape
    x = jnp.transpose(x_nchw, (0, 2, 3, 1)).reshape(-1, c_in).astype(jnp.float32)
    y1 = _leaky(x @ w1 + b1)
    z = y1 @ w2
    mean = jnp.mean(z, axis=0, keepdims=True)
    var = jnp.mean(z * z, axis=0, keepdims=True) - mean * mean
    bn = (z - mean) * lax.rsqrt(var + BN_EPS) * gamma + beta
    o = _leaky(bn) @ w3
    return jnp.transpose(o.reshape(n, h, w, 1), (0, 3, 1, 2))


# ------------------------------ Params ---------------------------------------
def init_params(key, input_nc, ndf):
    k1, k2, k3, kb = jax.random.split(key, 4)
    scale = 0.02  # pix2pix-style normal init
    return {
        "w1": scale * jax.random.normal(k1, (input_nc, ndf), jnp.float32),
        "b1": scale * jax.random.normal(kb, (1, ndf), jnp.float32),
        "w2": scale * jax.random.normal(k2, (ndf, 2 * ndf), jnp.float32),
        "gamma": jnp.ones((1, 2 * ndf), jnp.float32),      # BatchNorm2d default init
        "beta": jnp.zeros((1, 2 * ndf), jnp.float32),
        "w3": scale * jax.random.normal(k3, (2 * ndf, 1), jnp.float32),
    }


if __name__ == "__main__":
    key = jax.random.PRNGKey(0)

    # (N, C, H, W), ndf.  Second case exercises odd C and column padding (m=200).
    cases = [((2, 4, 16, 16), 8), ((2, 3, 10, 10), 8)]
    for case_i, (shape, ndf) in enumerate(cases):
        key, kx, kp = jax.random.split(key, 3)
        x = jax.random.normal(kx, shape, jnp.float32)
        params = init_params(kp, shape[1], ndf)
        ref = jax.block_until_ready(pixel_discriminator_ref(x, params))

        # Validate both the fused single-pass path (auto) and the two-pass fallback.
        for force in (None, False):
            out = jax.block_until_ready(pixel_discriminator(x, params, force_fused=force))
            assert out.shape == (shape[0], 1, shape[2], shape[3]), out.shape
            err = float(jnp.max(jnp.abs(out - ref)))
            assert jnp.allclose(out, ref, rtol=1e-4, atol=1e-4), (case_i, force, err)

    print("KERNEL_OK")
</pallas_src>

<mosaic_0001>
module attributes {stable_mosaic.version = 11 : i64} {
  func.func @kernel(%arg0: i32, %arg1: i32, %arg2: memref<4x512xf32, #tpu.memory_space<vmem>>, %arg3: memref<8x4xf32, #tpu.memory_space<vmem>>, %arg4: memref<8x1xf32, #tpu.memory_space<vmem>>, %arg5: memref<16x8xf32, #tpu.memory_space<vmem>>, %arg6: memref<16x1xf32, #tpu.memory_space<vmem>>, %arg7: memref<16x1xf32, #tpu.memory_space<vmem>>, %arg8: memref<8x16xf32, #tpu.memory_space<vmem>>, %arg9: memref<512x8xf32, #tpu.memory_space<vmem>>, %arg10: memref<16x2xf32, #tpu.memory_space<vmem>>, %arg11: memref<1x512xf32, #tpu.memory_space<vmem>>, %arg12: memref<16x2xf32, #tpu.memory_space<vmem>>, %arg13: memref<16x2xf32, #tpu.memory_space<vmem>>) attributes {dimension_semantics = [#tpu.dimension_semantics<arbitrary>, #tpu.dimension_semantics<arbitrary>], iteration_bounds = array<i64: 2, 1>, scalar_prefetch = 0 : i64, scratch_operands = 2 : i64, tpu.core_type = #tpu.core_type<tc>, window_params = [{pipeline_mode = #tpu.pipeline_mode<synchronous>, transform_indices = @transform_0, window_bounds = array<i64: 4, 512>}, {pipeline_mode = #tpu.pipeline_mode<synchronous>, transform_indices = @transform_1, window_bounds = array<i64: 8, 4>}, {pipeline_mode = #tpu.pipeline_mode<synchronous>, transform_indices = @transform_2, window_bounds = array<i64: 8, 1>}, {pipeline_mode = #tpu.pipeline_mode<synchronous>, transform_indices = @transform_3, window_bounds = array<i64: 16, 8>}, {pipeline_mode = #tpu.pipeline_mode<synchronous>, transform_indices = @transform_4, window_bounds = array<i64: 16, 1>}, {pipeline_mode = #tpu.pipeline_mode<synchronous>, transform_indices = @transform_5, window_bounds = array<i64: 16, 1>}, {pipeline_mode = #tpu.pipeline_mode<synchronous>, transform_indices = @transform_6, window_bounds = array<i64: 8, 16>}, {pipeline_mode = #tpu.pipeline_mode<synchronous>, transform_indices = @transform_7, window_bounds = array<i64: 512, 8>}, {pipeline_mode = #tpu.pipeline_mode<synchronous>, transform_indices = @transform_8, window_bounds = array<i64: 16, 2>}, {pipeline_mode = #tpu.pipeline_mode<synchronous>, transform_indices = @transform_9, window_bounds = array<i64: 1, 512>}]} {
    %c512_i32 = arith.constant 512 : i32
    %0 = arith.muli %arg1, %c512_i32 : i32
    %1 = tpu.assume_multiple %0, 128 : i32
    %c0 = arith.constant 0 : index
    %2 = arith.index_cast %1 : i32 to index
    %3 = vector.load %arg2[%c0, %2] : memref<4x512xf32, #tpu.memory_space<vmem>>, vector<4x512xf32>
    %c0_0 = arith.constant 0 : index
    %c0_1 = arith.constant 0 : index
    %4 = vector.load %arg3[%c0_0, %c0_1] : memref<8x4xf32, #tpu.memory_space<vmem>>, vector<8x4xf32>
    %cst = arith.constant dense<0.000000e+00> : vector<8x512xf32>
    %5 = tpu.matmul %4, %3, %cst {dimension_numbers = #tpu.dot_dimension_numbers<[1], [0], [0], [1], [0, 0, 1, 1], [], []>} : vector<8x4xf32>, vector<4x512xf32>, vector<8x512xf32> -> vector<8x512xf32>
    %c0_2 = arith.constant 0 : index
    %c0_3 = arith.constant 0 : index
    %6 = vector.load %arg4[%c0_2, %c0_3] : memref<8x1xf32, #tpu.memory_space<vmem>>, vector<8x1xf32>
    %7 = vector.broadcast %6 : vector<8x1xf32> to vector<8x512xf32>
    %8 = arith.addf %5, %7 : vector<8x512xf32>
    %cst_4 = arith.constant 2.000000e-01 : f32
    %9 = vector.broadcast %cst_4 : f32 to vector<8x512xf32>
    %10 = arith.mulf %9, %8 : vector<8x512xf32>
    %11 = arith.maximumf %8, %10 : vector<8x512xf32>
    %c0_5 = arith.constant 0 : index
    %c0_6 = arith.constant 0 : index
    %12 = vector.load %arg5[%c0_5, %c0_6] : memref<16x8xf32, #tpu.memory_space<vmem>>, vector<16x8xf32>
    %cst_7 = arith.constant dense<0.000000e+00> : vector<16x512xf32>
    %13 = tpu.matmul %12, %11, %cst_7 {dimension_numbers = #tpu.dot_dimension_numbers<[1], [0], [0], [1], [0, 0, 1, 1], [], []>} : vector<16x8xf32>, vector<8x512xf32>, vector<16x512xf32> -> vector<16x512xf32>
    %c0_i32 = arith.constant 0 : i32
    %14 = arith.cmpi eq, %arg0, %c0_i32 : i32
    %15 = arith.extui %14 : i1 to i32
    %c0_i32_8 = arith.constant 0 : i32
    %16 = arith.cmpi ne, %15, %c0_i32_8 : i32
    scf.if %16 {
      %c0_i32_10 = arith.constant 0 : i32
      %20 = arith.cmpi eq, %arg1, %c0_i32_10 : i32
      %21 = arith.extui %20 : i1 to i32
      %c0_i32_11 = arith.constant 0 : i32
      %22 = arith.cmpi ne, %21, %c0_i32_11 : i32
      scf.if %22 {
        %cst_25 = arith.constant 0.000000e+00 : f32
        %38 = vector.broadcast %cst_25 : f32 to vector<16x2xf32>
        %c0_26 = arith.constant 0 : index
        %c0_27 = arith.constant 0 : index
        %39 = vector.load %arg12[%c0_26, %c0_27] : memref<16x2xf32, #tpu.memory_space<vmem>>, vector<16x2xf32>
        tpu.vector_store %arg12[%c0_26, %c0_27], %38 {strides = array<i32>} : memref<16x2xf32, #tpu.memory_space<vmem>>, vector<16x2xf32>,
      } else {
      }
      %c0_12 = arith.constant 0 : index
      %c0_13 = arith.constant 0 : index
      %23 = vector.load %arg9[%c0_12, %c0_13] : memref<512x8xf32, #tpu.memory_space<vmem>>, vector<512x8xf32>
      %cst_14 = arith.constant dense<0.000000e+00> : vector<16x8xf32>
      %24 = tpu.matmul %13, %23, %cst_14 {dimension_numbers = #tpu.dot_dimension_numbers<[1], [0], [0], [1], [0, 0, 1, 1], [], []>} : vector<16x512xf32>, vector<512x8xf32>, vector<16x8xf32> -> vector<16x8xf32>
      %25 = vector.extract_strided_slice %24 {offsets = [0, 0], sizes = [16, 1], strides = [1, 1]} : vector<16x8xf32> to vector<16x1xf32>
      %26 = arith.mulf %13, %13 : vector<16x512xf32>
      %cst_15 = arith.constant dense<0.000000e+00> : vector<16x8xf32>
      %27 = tpu.matmul %26, %23, %cst_15 {dimension_numbers = #tpu.dot_dimension_numbers<[1], [0], [0], [1], [0, 0, 1, 1], [], []>} : vector<16x512xf32>, vector<512x8xf32>, vector<16x8xf32> -> vector<16x8xf32>
      %28 = vector.extract_strided_slice %27 {offsets = [0, 0], sizes = [16, 1], strides = [1, 1]} : vector<16x8xf32> to vector<16x1xf32>
      %c0_16 = arith.constant 0 : index
      %c0_17 = arith.constant 0 : index
      %29 = vector.load %arg12[%c0_16, %c0_17] : memref<16x2xf32, #tpu.memory_space<vmem>>, vector<16x1xf32>
      %30 = arith.addf %29, %25 : vector<16x1xf32>
      %c0_18 = arith.constant 0 : index
      %c0_19 = arith.constant 0 : index
      %31 = vector.load %arg12[%c0_18, %c0_19] : memref<16x2xf32, #tpu.memory_space<vmem>>, vector<16x1xf32>
      tpu.vector_store %arg12[%c0_18, %c0_19], %30 {strides = array<i32>} : memref<16x2xf32, #tpu.memory_space<vmem>>, vector<16x1xf32>,
      %c0_20 = arith.constant 0 : index
      %c1 = arith.constant 1 : index
      %32 = vector.load %arg12[%c0_20, %c1] : memref<16x2xf32, #tpu.memory_space<vmem>>, vector<16x1xf32>
      %33 = arith.addf %32, %28 : vector<16x1xf32>
      %c0_21 = arith.constant 0 : index
      %c1_22 = arith.constant 1 : index
      %34 = vector.load %arg12[%c0_21, %c1_22] : memref<16x2xf32, #tpu.memory_space<vmem>>, vector<16x1xf32>
      tpu.vector_store %arg12[%c0_21, %c1_22], %33 {strides = array<i32>} : memref<16x2xf32, #tpu.memory_space<vmem>>, vector<16x1xf32>,
      %c0_i32_23 = arith.constant 0 : i32
      %35 = arith.cmpi eq, %arg1, %c0_i32_23 : i32
      %36 = arith.extui %35 : i1 to i32
      %c0_i32_24 = arith.constant 0 : i32
      %37 = arith.cmpi ne, %36, %c0_i32_24 : i32
      scf.if %37 {
        %c0_25 = arith.constant 0 : index
        %c0_26 = arith.constant 0 : index
        %38 = vector.load %arg12[%c0_25, %c0_26] : memref<16x2xf32, #tpu.memory_space<vmem>>, vector<16x1xf32>
        %c0_27 = arith.constant 0 : index
        %c0_28 = arith.constant 0 : index
        %39 = vector.load %arg10[%c0_27, %c0_28] : memref<16x2xf32, #tpu.memory_space<vmem>>, vector<16x1xf32>
        %40 = arith.subf %38, %39 : vector<16x1xf32>
        %c0_29 = arith.constant 0 : index
        %c1_30 = arith.constant 1 : index
        %41 = vector.load %arg12[%c0_29, %c1_30] : memref<16x2xf32, #tpu.memory_space<vmem>>, vector<16x1xf32>
        %c0_31 = arith.constant 0 : index
        %c1_32 = arith.constant 1 : index
        %42 = vector.load %arg10[%c0_31, %c1_32] : memref<16x2xf32, #tpu.memory_space<vmem>>, vector<16x1xf32>
        %43 = arith.subf %41, %42 : vector<16x1xf32>
        %cst_33 = arith.constant 0.001953125 : f32
        %44 = vector.broadcast %cst_33 : f32 to vector<16x1xf32>
        %45 = arith.mulf %40, %44 : vector<16x1xf32>
        %cst_34 = arith.constant 0.001953125 : f32
        %46 = vector.broadcast %cst_34 : f32 to vector<16x1xf32>
        %47 = arith.mulf %43, %46 : vector<16x1xf32>
        %48 = arith.mulf %45, %45 : vector<16x1xf32>
        %49 = arith.subf %47, %48 : vector<16x1xf32>
        %c0_35 = arith.constant 0 : index
        %c0_36 = arith.constant 0 : index
        %50 = vector.load %arg6[%c0_35, %c0_36] : memref<16x1xf32, #tpu.memory_space<vmem>>, vector<16x1xf32>
        %cst_37 = arith.constant 9.99999974E-6 : f32
        %51 = vector.broadcast %cst_37 : f32 to vector<16x1xf32>
        %52 = arith.addf %49, %51 : vector<16x1xf32>
        %53 = math.rsqrt %52 : vector<16x1xf32>
        %54 = arith.mulf %50, %53 : vector<16x1xf32>
        %c0_38 = arith.constant 0 : index
        %c0_39 = arith.constant 0 : index
        %55 = vector.load %arg13[%c0_38, %c0_39] : memref<16x2xf32, #tpu.memory_space<vmem>>, vector<16x1xf32>
        tpu.vector_store %arg13[%c0_38, %c0_39], %54 {strides = array<i32>} : memref<16x2xf32, #tpu.memory_space<vmem>>, vector<16x1xf32>,
        %c0_40 = arith.constant 0 : index
        %c0_41 = arith.constant 0 : index
        %56 = vector.load %arg7[%c0_40, %c0_41] : memref<16x1xf32, #tpu.memory_space<vmem>>, vector<16x1xf32>
        %57 = arith.mulf %45, %54 : vector<16x1xf32>
        %58 = arith.subf %56, %57 : vector<16x1xf32>
        %c0_42 = arith.constant 0 : index
        %c1_43 = arith.constant 1 : index
        %59 = vector.load %arg13[%c0_42, %c1_43] : memref<16x2xf32, #tpu.memory_space<vmem>>, vector<16x1xf32>
        tpu.vector_store %arg13[%c0_42, %c1_43], %58 {strides = array<i32>} : memref<16x2xf32, #tpu.memory_space<vmem>>, vector<16x1xf32>,
      } else {
      }
    } else {
    }
    %c1_i32 = arith.constant 1 : i32
    %17 = arith.cmpi eq, %arg0, %c1_i32 : i32
    %18 = arith.extui %17 : i1 to i32
    %c0_i32_9 = arith.constant 0 : i32
    %19 = arith.cmpi ne, %18, %c0_i32_9 : i32
    scf.if %19 {
      %c0_10 = arith.constant 0 : index
      %c0_11 = arith.constant 0 : index
      %20 = vector.load %arg13[%c0_10, %c0_11] : memref<16x2xf32, #tpu.memory_space<vmem>>, vector<16x1xf32>
      %21 = vector.broadcast %20 : vector<16x1xf32> to vector<16x512xf32>
      %22 = arith.mulf %13, %21 : vector<16x512xf32>
      %c0_12 = arith.constant 0 : index
      %c1 = arith.constant 1 : index
      %23 = vector.load %arg13[%c0_12, %c1] : memref<16x2xf32, #tpu.memory_space<vmem>>, vector<16x1xf32>
      %24 = vector.broadcast %23 : vector<16x1xf32> to vector<16x512xf32>
      %25 = arith.addf %22, %24 : vector<16x512xf32>
      %cst_13 = arith.constant 2.000000e-01 : f32
      %26 = vector.broadcast %cst_13 : f32 to vector<16x512xf32>
      %27 = arith.mulf %26, %25 : vector<16x512xf32>
      %28 = arith.maximumf %25, %27 : vector<16x512xf32>
      %c0_14 = arith.constant 0 : index
      %c0_15 = arith.constant 0 : index
      %29 = vector.load %arg8[%c0_14, %c0_15] : memref<8x16xf32, #tpu.memory_space<vmem>>, vector<8x16xf32>
      %cst_16 = arith.constant dense<0.000000e+00> : vector<8x512xf32>
      %30 = tpu.matmul %29, %28, %cst_16 {dimension_numbers = #tpu.dot_dimension_numbers<[1], [0], [0], [1], [0, 0, 1, 1], [], []>} : vector<8x16xf32>, vector<16x512xf32>, vector<8x512xf32> -> vector<8x512xf32>
      %31 = vector.extract_strided_slice %30 {offsets = [0, 0], sizes = [1, 512], strides = [1, 1]} : vector<8x512xf32> to vector<1x512xf32>
      %c0_17 = arith.constant 0 : index
      %32 = arith.index_cast %1 : i32 to index
      %33 = vector.load %arg11[%c0_17, %32] : memref<1x512xf32, #tpu.memory_space<vmem>>, vector<1x512xf32>
      tpu.vector_store %arg11[%c0_17, %32], %31 {strides = array<i32>} : memref<1x512xf32, #tpu.memory_space<vmem>>, vector<1x512xf32>,
    } else {
    }
    return
  }
  func.func @transform_0(%arg0: i32, %arg1: i32) -> (i32, i32) {
    %c0_i32 = arith.constant 0 : i32
    %c0_i32_0 = arith.constant 0 : i32
    %c0_i32_1 = arith.constant 0 : i32
    return %c0_i32, %c0_i32_0 : i32, i32
  }
  func.func @transform_1(%arg0: i32, %arg1: i32) -> (i32, i32) {
    %c0_i32 = arith.constant 0 : i32
    %c0_i32_0 = arith.constant 0 : i32
    %c0_i32_1 = arith.constant 0 : i32
    return %c0_i32, %c0_i32_0 : i32, i32
  }
  func.func @transform_2(%arg0: i32, %arg1: i32) -> (i32, i32) {
    %c0_i32 = arith.constant 0 : i32
    %c0_i32_0 = arith.constant 0 : i32
    %c0_i32_1 = arith.constant 0 : i32
    return %c0_i32, %c0_i32_0 : i32, i32
  }
  func.func @transform_3(%arg0: i32, %arg1: i32) -> (i32, i32) {
    %c0_i32 = arith.constant 0 : i32
    %c0_i32_0 = arith.constant 0 : i32
    %c0_i32_1 = arith.constant 0 : i32
    return %c0_i32, %c0_i32_0 : i32, i32
  }
  func.func @transform_4(%arg0: i32, %arg1: i32) -> (i32, i32) {
    %c0_i32 = arith.constant 0 : i32
    %c0_i32_0 = arith.constant 0 : i32
    %c0_i32_1 = arith.constant 0 : i32
    return %c0_i32, %c0_i32_0 : i32, i32
  }
  func.func @transform_5(%arg0: i32, %arg1: i32) -> (i32, i32) {
    %c0_i32 = arith.constant 0 : i32
    %c0_i32_0 = arith.constant 0 : i32
    %c0_i32_1 = arith.constant 0 : i32
    return %c0_i32, %c0_i32_0 : i32, i32
  }
  func.func @transform_6(%arg0: i32, %arg1: i32) -> (i32, i32) {
    %c0_i32 = arith.constant 0 : i32
    %c0_i32_0 = arith.constant 0 : i32
    %c0_i32_1 = arith.constant 0 : i32
    return %c0_i32, %c0_i32_0 : i32, i32
  }
  func.func @transform_7(%arg0: i32, %arg1: i32) -> (i32, i32) {
    %c0_i32 = arith.constant 0 : i32
    %c0_i32_0 = arith.constant 0 : i32
    %c0_i32_1 = arith.constant 0 : i32
    return %c0_i32, %c0_i32_0 : i32, i32
  }
  func.func @transform_8(%arg0: i32, %arg1: i32) -> (i32, i32) {
    %c0_i32 = arith.constant 0 : i32
    %c0_i32_0 = arith.constant 0 : i32
    %c0_i32_1 = arith.constant 0 : i32
    return %c0_i32, %c0_i32_0 : i32, i32
  }
  func.func @transform_9(%arg0: i32, %arg1: i32) -> (i32, i32) {
    %c0_i32 = arith.constant 0 : i32
    %c0_i32_0 = arith.constant 0 : i32
    %c0_i32_1 = arith.constant 0 : i32
    return %c0_i32, %c0_i32_0 : i32, i32
  }
}

</mosaic_0001>

<llo_original>
// kernel: tpu_custom_call.1
$region0: #{tpu_custom_call.1}
  #allocation0 [shape = 'u32[]', space=smem, size = 0x4, offset = 0x4, fixed_abs, tag = 'smem constant byte address 0x4 - core index']
  #allocation1 [shape = 'u32[72,128]{1,0:T(1,128)}', space=vmem, size = 0x9000, scoped, tag = 'internal scratch']
  #allocation2 [shape = 'f32[16,2]{1,0:T(8,128)}', space=vmem, size = 0x2000, scoped, tag = 'scratch operand']
  #allocation3 [shape = 'f32[16,2]{1,0:T(8,128)}', space=vmem, size = 0x2000, scoped, tag = 'scratch operand']
  %s0 = inlined_call_operand.vmem [shape: f32[4,512], index: 0, kind: input, shape index: {}]
  %s1 = inlined_call_operand.vmem [shape: f32[8,4], index: 1, kind: input, shape index: {}]
  %s2 = inlined_call_operand.vmem [shape: f32[8,1], index: 2, kind: input, shape index: {}]
  %s3 = inlined_call_operand.vmem [shape: f32[16,8], index: 3, kind: input, shape index: {}]
  %s4 = inlined_call_operand.vmem [shape: f32[16,1], index: 4, kind: input, shape index: {}]
  %s5 = inlined_call_operand.vmem [shape: f32[16,1], index: 5, kind: input, shape index: {}]
  %s6 = inlined_call_operand.vmem [shape: f32[8,16], index: 6, kind: input, shape index: {}]
  %s7 = inlined_call_operand.vmem [shape: f32[512,8], index: 7, kind: input, shape index: {}]
  %s8 = inlined_call_operand.vmem [shape: f32[16,2], index: 8, kind: input, shape index: {}]
  %s9 = inlined_call_operand.hbm [shape: f32[1,512], index: 9, kind: output, shape index: {}]
  %s10 = sld [smem:[#allocation0]]
  $region85: #{tpu_custom_call.1} parent=0
    _
  %s12 = ssub.s32 1, %s10
  %s13 = scalar_select 0, %s12, %s10
  $region1: #{tpu_custom_call.1} parent=0
    #allocation4 [shape = 'u8[2048]{0}', space=vmem, size = 0x800, scoped, tag = 'output window, operand 0, single buffered']
    #allocation5 [shape = 's32[2]{0}', space=sflag, size = 0x8, scoped, tag = 'scoped memory for tpu_custom_call.1']
    %14 = vsyncpa [#allocation5], 0
    loop: start=0, step=1, limit=4
    $region2: #{tpu_custom_call.1} parent=1 // loop_pre_header
      _
    $region3: #{tpu_custom_call.1} parent=1 // loop_header
      %s16 = sphi 0, %s20
      %p17 = scmp.ge.s32.totalorder %s16, 4
      %s23 = sphi 0, %s35
      %s24 = sphi 0, %s31
      %s25 = sphi 0, %s23
      %s26 = sphi 0, %s24
      %s27 = sphi 0, %s25
      %s28 = sphi 0, %s26
      %s36 = sphi 0, %s36
      %s38 = sphi 0, %s36
      %s39 = sphi 0, %s38
      %s53 = sphi 0, %s39
      %s57 = sphi 0, %s57
      %s59 = sphi 0, %s57
      %s60 = sphi 0, %s59
      %s74 = sphi 0, %s60
      %s78 = sphi 0, %s78
      %s80 = sphi 0, %s78
      %s81 = sphi 0, %s80
      %s95 = sphi 0, %s81
      %s99 = sphi 0, %s99
      %s101 = sphi 0, %s99
      %s102 = sphi 0, %s101
      %s116 = sphi 0, %s102
      %s120 = sphi 0, %s120
      %s122 = sphi 0, %s120
      %s123 = sphi 0, %s122
      %s137 = sphi 0, %s123
      %s141 = sphi 0, %s141
      %s143 = sphi 0, %s141
      %s144 = sphi 0, %s143
      %s158 = sphi 0, %s144
      %s162 = sphi 0, %s162
      %s164 = sphi 0, %s162
      %s165 = sphi 0, %s164
      %s179 = sphi 0, %s165
      %s183 = sphi 0, %s183
      %s185 = sphi 0, %s183
      %s186 = sphi 0, %s185
      %s200 = sphi 0, %s186
      %s204 = sphi 0, %s204
      %s206 = sphi 0, %s204
      %s207 = sphi 0, %s206
      %s221 = sphi 0, %s207
      %s225 = sphi 0, %s225
      %s227 = sphi 0, %s225
      %s228 = sphi 0, %s227
      %s242 = sphi 0, %s228
    $region4: #{tpu_custom_call.1} parent=1 // loop_header_branch
      %19 = sbr.rel (%p17) target = $region8
    $region5: #{tpu_custom_call.1} parent=1 // loop_body
      %s21 = ssub.s32 %s16, 1
      %s22 = ssub.s32 %s16, 2
      %s29 = sadd.s32 1, %s24
      %p30 = scmp.ge.s32.totalorder %s29, 1
      %s31 = scalar_select %p30, 0, %s29
      %s32 = sadd.s32 1, %s23
      %s33 = scalar_select %p30, %s32, %s23
      %p34 = scmp.ge.s32.totalorder %s33, 2
      %s35 = scalar_select %p34, 0, %s33
      %s37 = sadd.s32 %s36, 1
      %p40 = scmp.eq.s32.totalorder %s16, 1
      %p41 = scmp.ne.s32.totalorder %s36, %s38
      %p42 = scmp.eq.s32.totalorder %s16, 0
      %p43 = por %p41, %p42
      %p44 = scmp.ne.s32.totalorder %s36, %s38
      %p45 = scmp.eq.s32.totalorder %s21, 1
      %p46 = por %p44, %p45
      %p47 = scmp.ne.s32.totalorder %s38, %s39
      %p48 = scmp.eq.s32.totalorder %s21, 0
      %p49 = por %p47, %p48
      %p50 = scmp.ne.s32.totalorder %s38, %s39
      %p51 = scmp.eq.s32.totalorder %s22, 1
      %p52 = por %p50, %p51
      %p54 = scmp.ne.s32.totalorder %s39, %s53
      %p55 = scmp.eq.s32.totalorder %s22, 0
      %p56 = por %p54, %p55
      %s58 = sadd.s32 %s57, 1
      %p61 = scmp.eq.s32.totalorder %s16, 1
      %p62 = scmp.ne.s32.totalorder %s57, %s59
      %p63 = scmp.eq.s32.totalorder %s16, 0
      %p64 = por %p62, %p63
      %p65 = scmp.ne.s32.totalorder %s57, %s59
      %p66 = scmp.eq.s32.totalorder %s21, 1
      %p67 = por %p65, %p66
      %p68 = scmp.ne.s32.totalorder %s59, %s60
      %p69 = scmp.eq.s32.totalorder %s21, 0
      %p70 = por %p68, %p69
      %p71 = scmp.ne.s32.totalorder %s59, %s60
      %p72 = scmp.eq.s32.totalorder %s22, 1
      %p73 = por %p71, %p72
      %p75 = scmp.ne.s32.totalorder %s60, %s74
      %p76 = scmp.eq.s32.totalorder %s22, 0
      %p77 = por %p75, %p76
      %s79 = sadd.s32 %s78, 1
      %p82 = scmp.eq.s32.totalorder %s16, 1
      %p83 = scmp.ne.s32.totalorder %s78, %s80
      %p84 = scmp.eq.s32.totalorder %s16, 0
      %p85 = por %p83, %p84
      %p86 = scmp.ne.s32.totalorder %s78, %s80
      %p87 = scmp.eq.s32.totalorder %s21, 1
      %p88 = por %p86, %p87
      %p89 = scmp.ne.s32.totalorder %s80, %s81
      %p90 = scmp.eq.s32.totalorder %s21, 0
      %p91 = por %p89, %p90
      %p92 = scmp.ne.s32.totalorder %s80, %s81
      %p93 = scmp.eq.s32.totalorder %s22, 1
      %p94 = por %p92, %p93
      %p96 = scmp.ne.s32.totalorder %s81, %s95
      %p97 = scmp.eq.s32.totalorder %s22, 0
      %p98 = por %p96, %p97
      %s100 = sadd.s32 %s99, 1
      %p103 = scmp.eq.s32.totalorder %s16, 1
      %p104 = scmp.ne.s32.totalorder %s99, %s101
      %p105 = scmp.eq.s32.totalorder %s16, 0
      %p106 = por %p104, %p105
      %p107 = scmp.ne.s32.totalorder %s99, %s101
      %p108 = scmp.eq.s32.totalorder %s21, 1
      %p109 = por %p107, %p108
      %p110 = scmp.ne.s32.totalorder %s101, %s102
      %p111 = scmp.eq.s32.totalorder %s21, 0
      %p112 = por %p110, %p111
      %p113 = scmp.ne.s32.totalorder %s101, %s102
      %p114 = scmp.eq.s32.totalorder %s22, 1
      %p115 = por %p113, %p114
      %p117 = scmp.ne.s32.totalorder %s102, %s116
      %p118 = scmp.eq.s32.totalorder %s22, 0
      %p119 = por %p117, %p118
      %s121 = sadd.s32 %s120, 1
      %p124 = scmp.eq.s32.totalorder %s16, 1
      %p125 = scmp.ne.s32.totalorder %s120, %s122
      %p126 = scmp.eq.s32.totalorder %s16, 0
      %p127 = por %p125, %p126
      %p128 = scmp.ne.s32.totalorder %s120, %s122
      %p129 = scmp.eq.s32.totalorder %s21, 1
      %p130 = por %p128, %p129
      %p131 = scmp.ne.s32.totalorder %s122, %s123
      %p132 = scmp.eq.s32.totalorder %s21, 0
      %p133 = por %p131, %p132
      %p134 = scmp.ne.s32.totalorder %s122, %s123
      %p135 = scmp.eq.s32.totalorder %s22, 1
      %p136 = por %p134, %p135
      %p138 = scmp.ne.s32.totalorder %s123, %s137
      %p139 = scmp.eq.s32.totalorder %s22, 0
      %p140 = por %p138, %p139
      %s142 = sadd.s32 %s141, 1
      %p145 = scmp.eq.s32.totalorder %s16, 1
      %p146 = scmp.ne.s32.totalorder %s141, %s143
      %p147 = scmp.eq.s32.totalorder %s16, 0
      %p148 = por %p146, %p147
      %p149 = scmp.ne.s32.totalorder %s141, %s143
      %p150 = scmp.eq.s32.totalorder %s21, 1
      %p151 = por %p149, %p150
      %p152 = scmp.ne.s32.totalorder %s143, %s144
      %p153 = scmp.eq.s32.totalorder %s21, 0
      %p154 = por %p152, %p153
      %p155 = scmp.ne.s32.totalorder %s143, %s144
      %p156 = scmp.eq.s32.totalorder %s22, 1
      %p157 = por %p155, %p156
      %p159 = scmp.ne.s32.totalorder %s144, %s158
      %p160 = scmp.eq.s32.totalorder %s22, 0
      %p161 = por %p159, %p160
      %s163 = sadd.s32 %s162, 1
      %p166 = scmp.eq.s32.totalorder %s16, 1
      %p167 = scmp.ne.s32.totalorder %s162, %s164
      %p168 = scmp.eq.s32.totalorder %s16, 0
      %p169 = por %p167, %p168
      %p170 = scmp.ne.s32.totalorder %s162, %s164
      %p171 = scmp.eq.s32.totalorder %s21, 1
      %p172 = por %p170, %p171
      %p173 = scmp.ne.s32.totalorder %s164, %s165
      %p174 = scmp.eq.s32.totalorder %s21, 0
      %p175 = por %p173, %p174
      %p176 = scmp.ne.s32.totalorder %s164, %s165
      %p177 = scmp.eq.s32.totalorder %s22, 1
      %p178 = por %p176, %p177
      %p180 = scmp.ne.s32.totalorder %s165, %s179
      %p181 = scmp.eq.s32.totalorder %s22, 0
      %p182 = por %p180, %p181
      %s184 = sadd.s32 %s183, 1
      %p187 = scmp.eq.s32.totalorder %s16, 1
      %p188 = scmp.ne.s32.totalorder %s183, %s185
      %p189 = scmp.eq.s32.totalorder %s16, 0
      %p190 = por %p188, %p189
      %p191 = scmp.ne.s32.totalorder %s183, %s185
      %p192 = scmp.eq.s32.totalorder %s21, 1
      %p193 = por %p191, %p192
      %p194 = scmp.ne.s32.totalorder %s185, %s186
      %p195 = scmp.eq.s32.totalorder %s21, 0
      %p196 = por %p194, %p195
      %p197 = scmp.ne.s32.totalorder %s185, %s186
      %p198 = scmp.eq.s32.totalorder %s22, 1
      %p199 = por %p197, %p198
      %p201 = scmp.ne.s32.totalorder %s186, %s200
      %p202 = scmp.eq.s32.totalorder %s22, 0
      %p203 = por %p201, %p202
      %s205 = sadd.s32 %s204, 1
      %p208 = scmp.eq.s32.totalorder %s16, 1
      %p209 = scmp.ne.s32.totalorder %s204, %s206
      %p210 = scmp.eq.s32.totalorder %s16, 0
      %p211 = por %p209, %p210
      %p212 = scmp.ne.s32.totalorder %s204, %s206
      %p213 = scmp.eq.s32.totalorder %s21, 1
      %p214 = por %p212, %p213
      %p215 = scmp.ne.s32.totalorder %s206, %s207
      %p216 = scmp.eq.s32.totalorder %s21, 0
      %p217 = por %p215, %p216
      %p218 = scmp.ne.s32.totalorder %s206, %s207
      %p219 = scmp.eq.s32.totalorder %s22, 1
      %p220 = por %p218, %p219
      %p222 = scmp.ne.s32.totalorder %s207, %s221
      %p223 = scmp.eq.s32.totalorder %s22, 0
      %p224 = por %p222, %p223
      %s226 = sadd.s32 %s225, 1
      %p229 = scmp.eq.s32.totalorder %s16, 1
      %p230 = scmp.ne.s32.totalorder %s225, %s227
      %p231 = scmp.eq.s32.totalorder %s16, 0
      %p232 = por %p230, %p231
      %p233 = scmp.ne.s32.totalorder %s225, %s227
      %p234 = scmp.eq.s32.totalorder %s21, 1
      %p235 = por %p233, %p234
      %p236 = scmp.ne.s32.totalorder %s227, %s228
      %p237 = scmp.eq.s32.totalorder %s21, 0
      %p238 = por %p236, %p237
      %p239 = scmp.ne.s32.totalorder %s227, %s228
      %p240 = scmp.eq.s32.totalorder %s22, 1
      %p241 = por %p239, %p240
      %p243 = scmp.ne.s32.totalorder %s228, %s242
      %p244 = scmp.eq.s32.totalorder %s22, 0
      %p245 = por %p243, %p244
      %p246 = scmp.le.s32.totalorder 1, %s16
      %p247 = scmp.lt.s32.totalorder %s16, 3
      %p248 = pnand %p246, %p247
      %p249 = pneg %p248
      // Predicated region
      $region9: #{tpu_custom_call.1} parent=5 // pred_check
        _
      $region10: #{tpu_custom_call.1} parent=5 // pred_check_branch
        %251 = sbr.rel (%p248) target = $region12
      $region11: #{tpu_custom_call.1} parent=5 // pred_region
        %s252 = ssub.s32 %s16, 1
        // Predicated region
        $region13: #{tpu_custom_call.1} parent=11 // pred_check
          %p253 = pneg %p49
        $region14: #{tpu_custom_call.1} parent=11 // pred_check_branch
          %255 = sbr.rel (%p253) target = $region16
        $region15: #{tpu_custom_call.1} parent=11 // pred_region
          _
        $region16: #{tpu_custom_call.1} parent=11 // pred_fallthru
          _
        // Predicated region
        $region17: #{tpu_custom_call.1} parent=11 // pred_check
          %p256 = pneg %p70
        $region18: #{tpu_custom_call.1} parent=11 // pred_check_branch
          %258 = sbr.rel (%p256) target = $region20
        $region19: #{tpu_custom_call.1} parent=11 // pred_region
          _
        $region20: #{tpu_custom_call.1} parent=11 // pred_fallthru
          _
        // Predicated region
        $region21: #{tpu_custom_call.1} parent=11 // pred_check
          %p259 = pneg %p91
        $region22: #{tpu_custom_call.1} parent=11 // pred_check_branch
          %261 = sbr.rel (%p259) target = $region24
        $region23: #{tpu_custom_call.1} parent=11 // pred_region
          _
        $region24: #{tpu_custom_call.1} parent=11 // pred_fallthru
          _
        // Predicated region
        $region25: #{tpu_custom_call.1} parent=11 // pred_check
          %p262 = pneg %p112
        $region26: #{tpu_custom_call.1} parent=11 // pred_check_branch
          %264 = sbr.rel (%p262) target = $region28
        $region27: #{tpu_custom_call.1} parent=11 // pred_region
          _
        $region28: #{tpu_custom_call.1} parent=11 // pred_fallthru
          _
        // Predicated region
        $region29: #{tpu_custom_call.1} parent=11 // pred_check
          %p265 = pneg %p133
        $region30: #{tpu_custom_call.1} parent=11 // pred_check_branch
          %267 = sbr.rel (%p265) target = $region32
        $region31: #{tpu_custom_call.1} parent=11 // pred_region
          _
        $region32: #{tpu_custom_call.1} parent=11 // pred_fallthru
          _
        // Predicated region
        $region33: #{tpu_custom_call.1} parent=11 // pred_check
          %p268 = pneg %p154
        $region34: #{tpu_custom_call.1} parent=11 // pred_check_branch
          %270 = sbr.rel (%p268) target = $region36
        $region35: #{tpu_custom_call.1} parent=11 // pred_region
          _
        $region36: #{tpu_custom_call.1} parent=11 // pred_fallthru
          _
        // Predicated region
        $region37: #{tpu_custom_call.1} parent=11 // pred_check
          %p271 = pneg %p175
        $region38: #{tpu_custom_call.1} parent=11 // pred_check_branch
          %273 = sbr.rel (%p271) target = $region40
        $region39: #{tpu_custom_call.1} parent=11 // pred_region
          _
        $region40: #{tpu_custom_call.1} parent=11 // pred_fallthru
          _
        // Predicated region
        $region41: #{tpu_custom_call.1} parent=11 // pred_check
          %p274 = pneg %p196
        $region42: #{tpu_custom_call.1} parent=11 // pred_check_branch
          %276 = sbr.rel (%p274) target = $region44
        $region43: #{tpu_custom_call.1} parent=11 // pred_region
          _
        $region44: #{tpu_custom_call.1} parent=11 // pred_fallthru
          _
        // Predicated region
        $region45: #{tpu_custom_call.1} parent=11 // pred_check
          %p277 = pneg %p217
        $region46: #{tpu_custom_call.1} parent=11 // pred_check_branch
          %279 = sbr.rel (%p277) target = $region48
        $region47: #{tpu_custom_call.1} parent=11 // pred_region
          _
        $region48: #{tpu_custom_call.1} parent=11 // pred_fallthru
          _
      $region12: #{tpu_custom_call.1} parent=5 // pred_fallthru
        _
      %p280 = scmp.lt.s32.totalorder %s16, 2
      // Predicated region
      $region49: #{tpu_custom_call.1} parent=5 // pred_check
        %p281 = pneg %p280
      $region50: #{tpu_custom_call.1} parent=5 // pred_check_branch
        %283 = sbr.rel (%p281) target = $region52
      $region51: #{tpu_custom_call.1} parent=5 // pred_region
        _
      $region52: #{tpu_custom_call.1} parent=5 // pred_fallthru
        _
      %p284 = scmp.le.s32.totalorder 1, %s16
      %p285 = scmp.lt.s32.totalorder %s16, 3
      %p286 = pnand %p284, %p285
      %p287 = pneg %p286
      // Predicated region
      $region53: #{tpu_custom_call.1} parent=5 // pred_check
        _
      $region54: #{tpu_custom_call.1} parent=5 // pred_check_branch
        %289 = sbr.rel (%p286) target = $region56
      $region55: #{tpu_custom_call.1} parent=5 // pred_region
        %s290 = ssub.s32 %s16, 1
        %p291 = pneg %p49
        %p292 = pneg %p46
        %p293 = pneg %p70
        %p294 = pneg %p67
        %p295 = pneg %p91
        %p296 = pneg %p88
        %p297 = pneg %p112
        %p298 = pneg %p109
        %p299 = pneg %p133
        %p300 = pneg %p130
        %p301 = pneg %p154
        %p302 = pneg %p151
        %p303 = pneg %p175
        %p304 = pneg %p172
        %p305 = pneg %p196
        %p306 = pneg %p193
        %p307 = pneg %p217
        %p308 = pneg %p214
        %p309 = pneg %p238
        %p310 = pneg %p235
        %s311 = smul.u32 %s26, 512
        %s312 = sshra.s32 %s311, 7
        %s313 = sand.u32 %s311, 127
        %s314 = smul.addr %s312, 4
        %s315 = scalar_lea.vmem %s0, %s314
        %v316 = vld [vmem:[%s315] sm:$0xff]
        %v317 = vld [vmem:[%s315 + $0x8] sm:$0xff]
        %v318 = vld [vmem:[%s1] sm:$0xff]
        %v319 = vld [vmem:[%s2] sm:$0xff]
        %321 = vset.pattern.permute.xlu0 0
        %322 = vperm.xlu0 %321, %v319
        %v323 = vpop.permute.xlu0 %322
        %327 = vst [vmem:[#allocation1] ss:$2 sm:$0xff] %v316
        %s328 = scalar_lea.vmem [#allocation1], 16
        %329 = vst [vmem:[%s328] ss:$2 sm:$0xff] %v317
        %v330 = vld.sshfl [vmem:[#allocation1] sm:$0xff pattern:$0x75316420]
        %v331 = vld.sshfl [vmem:[#allocation1 + $0x8] sm:$0xff pattern:$0x75316420]
        %v332 = vld.sshfl [vmem:[#allocation1 + $0x10] sm:$0xff pattern:$0x75316420]
        %v333 = vld.sshfl [vmem:[#allocation1 + $0x18] sm:$0xff pattern:$0x75316420]
        %vm334 = vcmask 31744
        %v336 = vsel %vm334, %v318, 0
        %vm338 = vcmask 1043456
        %v339 = vsel %vm338, %v330, 0
        %v341 = vsel %vm338, %v331, 0
        %v343 = vsel %vm338, %v332, 0
        %v345 = vsel %vm338, %v333, 0
        %347 = vmatpush.msra.mxu0 0.0
        %348 = vmatpush.msra.mxu0 0.0
        %349 = vmatpush.msra.mxu0 0.0
        %350 = vmatpush.msra.mxu0 0.0
        %351 = vmatpush.msra.mxu0 0.0
        %352 = vmatpush.msra.mxu0 0.0
        %353 = vmatpush.msra.mxu0 0.0
        %354 = vmatpush.msra.mxu0 0.0
        %355 = vmatpush.msra.mxu0 0.0
        %356 = vmatpush.msra.mxu0 0.0
        %357 = vmatpush.msra.mxu0 0.0
        %358 = vmatpush.msra.mxu0 0.0
        %359 = vmatpush.msra.mxu0 0.0
        %360 = vmatpush.msra.mxu0 0.0
        %361 = vmatpush.msra.mxu0 0.0
        %362 = vmatpush.msra.mxu0 %v339
        %363 = vmatmul.f32.gmra.mxu0 %v336
        %v364 = vpop.f32.mrf.mxu0
        %v365 = vadd.f32 %v323, %v364
        %366 = vdwg.mxu0
        %367 = vmatpush.msra.mxu0 0.0
        %368 = vmatpush.msra.mxu0 0.0
        %369 = vmatpush.msra.mxu0 0.0
        %370 = vmatpush.msra.mxu0 0.0
        %371 = vmatpush.msra.mxu0 0.0
        %372 = vmatpush.msra.mxu0 0.0
        %373 = vmatpush.msra.mxu0 0.0
        %374 = vmatpush.msra.mxu0 0.0
        %375 = vmatpush.msra.mxu0 0.0
        %376 = vmatpush.msra.mxu0 0.0
        %377 = vmatpush.msra.mxu0 0.0
        %378 = vmatpush.msra.mxu0 0.0
        %379 = vmatpush.msra.mxu0 0.0
        %380 = vmatpush.msra.mxu0 0.0
        %381 = vmatpush.msra.mxu0 0.0
        %382 = vmatpush.msra.mxu0 %v341
        %383 = vmatmul.f32.gmra.mxu0 %v336
        %v384 = vpop.f32.mrf.mxu0
        %v385 = vadd.f32 %v323, %v384
        %386 = vdwg.mxu0
        %387 = vmatpush.msra.mxu0 0.0
        %388 = vmatpush.msra.mxu0 0.0
        %389 = vmatpush.msra.mxu0 0.0
        %390 = vmatpush.msra.mxu0 0.0
        %391 = vmatpush.msra.mxu0 0.0
        %392 = vmatpush.msra.mxu0 0.0
        %393 = vmatpush.msra.mxu0 0.0
        %394 = vmatpush.msra.mxu0 0.0
        %395 = vmatpush.msra.mxu0 0.0
        %396 = vmatpush.msra.mxu0 0.0
        %397 = vmatpush.msra.mxu0 0.0
        %398 = vmatpush.msra.mxu0 0.0
        %399 = vmatpush.msra.mxu0 0.0
        %400 = vmatpush.msra.mxu0 0.0
        %401 = vmatpush.msra.mxu0 0.0
        %402 = vmatpush.msra.mxu0 %v343
        %403 = vmatmul.f32.gmra.mxu0 %v336
        %v404 = vpop.f32.mrf.mxu0
        %v405 = vadd.f32 %v323, %v404
        %406 = vdwg.mxu0
        %407 = vmatpush.msra.mxu0 0.0
        %408 = vmatpush.msra.mxu0 0.0
        %409 = vmatpush.msra.mxu0 0.0
        %410 = vmatpush.msra.mxu0 0.0
        %411 = vmatpush.msra.mxu0 0.0
        %412 = vmatpush.msra.mxu0 0.0
        %413 = vmatpush.msra.mxu0 0.0
        %414 = vmatpush.msra.mxu0 0.0
        %415 = vmatpush.msra.mxu0 0.0
        %416 = vmatpush.msra.mxu0 0.0
        %417 = vmatpush.msra.mxu0 0.0
        %418 = vmatpush.msra.mxu0 0.0
        %419 = vmatpush.msra.mxu0 0.0
        %420 = vmatpush.msra.mxu0 0.0
        %421 = vmatpush.msra.mxu0 0.0
        %422 = vmatpush.msra.mxu0 %v345
        %423 = vmatmul.f32.gmra.mxu0 %v336
        %v424 = vpop.f32.mrf.mxu0
        %v425 = vadd.f32 %v323, %v424
        %426 = vdwg.mxu0
        %v427 = vmul.f32 %v365, 0.2
        %v428 = vmul.f32 %v385, 0.2
        %v429 = vmul.f32 %v405, 0.2
        %v430 = vmul.f32 %v425, 0.2
        %v431 = vmax.f32 %v365, %v427
        %v432 = vmax.f32 %v385, %v428
        %v433 = vmax.f32 %v405, %v429
        %v434 = vmax.f32 %v425, %v430
        %v435 = vld [vmem:[%s3] sm:$0xff]
        %v436 = vld [vmem:[%s3 + $0x8] sm:$0xff]
        %vm437 = vcmask 64512
        %v439 = vsel %vm437, %v435, 0
        %v442 = vsel %vm437, %v436, 0
        %444 = vmatpush.msra.mxu0 0.0
        %445 = vmatpush.msra.mxu0 0.0
        %446 = vmatpush.msra.mxu0 0.0
        %447 = vmatpush.msra.mxu0 0.0
        %448 = vmatpush.msra.mxu0 0.0
        %449 = vmatpush.msra.mxu0 0.0
        %450 = vmatpush.msra.mxu0 0.0
        %451 = vmatpush.msra.mxu0 0.0
        %452 = vmatpush.msra.mxu0 0.0
        %453 = vmatpush.msra.mxu0 0.0
        %454 = vmatpush.msra.mxu0 0.0
        %455 = vmatpush.msra.mxu0 0.0
        %456 = vmatpush.msra.mxu0 0.0
        %457 = vmatpush.msra.mxu0 0.0
        %458 = vmatpush.msra.mxu0 0.0
        %459 = vmatpush.msra.mxu0 %v431
        %460 = vmatmul.f32.gmra.mxu0 %v439
        %v461 = vpop.f32.mrf.mxu0
        %v462 = vadd.f32 0.0, %v461
        %463 = vmatmul.f32.gmra.mxu0 %v442
        %v464 = vpop.f32.mrf.mxu0
        %v465 = vadd.f32 0.0, %v464
        %466 = vdwg.mxu0
        %467 = vmatpush.msra.mxu0 0.0
        %468 = vmatpush.msra.mxu0 0.0
        %469 = vmatpush.msra.mxu0 0.0
        %470 = vmatpush.msra.mxu0 0.0
        %471 = vmatpush.msra.mxu0 0.0
        %472 = vmatpush.msra.mxu0 0.0
        %473 = vmatpush.msra.mxu0 0.0
        %474 = vmatpush.msra.mxu0 0.0
        %475 = vmatpush.msra.mxu0 0.0
        %476 = vmatpush.msra.mxu0 0.0
        %477 = vmatpush.msra.mxu0 0.0
        %478 = vmatpush.msra.mxu0 0.0
        %479 = vmatpush.msra.mxu0 0.0
        %480 = vmatpush.msra.mxu0 0.0
        %481 = vmatpush.msra.mxu0 0.0
        %482 = vmatpush.msra.mxu0 %v432
        %483 = vmatmul.f32.gmra.mxu0 %v439
        %v484 = vpop.f32.mrf.mxu0
        %v485 = vadd.f32 0.0, %v484
        %486 = vmatmul.f32.gmra.mxu0 %v442
        %v487 = vpop.f32.mrf.mxu0
        %v488 = vadd.f32 0.0, %v487
        %489 = vdwg.mxu0
        %490 = vmatpush.msra.mxu0 0.0
        %491 = vmatpush.msra.mxu0 0.0
        %492 = vmatpush.msra.mxu0 0.0
        %493 = vmatpush.msra.mxu0 0.0
        %494 = vmatpush.msra.mxu0 0.0
        %495 = vmatpush.msra.mxu0 0.0
        %496 = vmatpush.msra.mxu0 0.0
        %497 = vmatpush.msra.mxu0 0.0
        %498 = vmatpush.msra.mxu0 0.0
        %499 = vmatpush.msra.mxu0 0.0
        %500 = vmatpush.msra.mxu0 0.0
        %501 = vmatpush.msra.mxu0 0.0
        %502 = vmatpush.msra.mxu0 0.0
        %503 = vmatpush.msra.mxu0 0.0
        %504 = vmatpush.msra.mxu0 0.0
        %505 = vmatpush.msra.mxu0 %v433
        %506 = vmatmul.f32.gmra.mxu0 %v439
        %v507 = vpop.f32.mrf.mxu0
        %v508 = vadd.f32 0.0, %v507
        %509 = vmatmul.f32.gmra.mxu0 %v442
        %v510 = vpop.f32.mrf.mxu0
        %v511 = vadd.f32 0.0, %v510
        %512 = vdwg.mxu0
        %513 = vmatpush.msra.mxu0 0.0
        %514 = vmatpush.msra.mxu0 0.0
        %515 = vmatpush.msra.mxu0 0.0
        %516 = vmatpush.msra.mxu0 0.0
        %517 = vmatpush.msra.mxu0 0.0
        %518 = vmatpush.msra.mxu0 0.0
        %519 = vmatpush.msra.mxu0 0.0
        %520 = vmatpush.msra.mxu0 0.0
        %521 = vmatpush.msra.mxu0 0.0
        %522 = vmatpush.msra.mxu0 0.0
        %523 = vmatpush.msra.mxu0 0.0
        %524 = vmatpush.msra.mxu0 0.0
        %525 = vmatpush.msra.mxu0 0.0
        %526 = vmatpush.msra.mxu0 0.0
        %527 = vmatpush.msra.mxu0 0.0
        %528 = vmatpush.msra.mxu0 %v434
        %529 = vmatmul.f32.gmra.mxu0 %v439
        %v530 = vpop.f32.mrf.mxu0
        %v531 = vadd.f32 0.0, %v530
        %532 = vmatmul.f32.gmra.mxu0 %v442
        %v533 = vpop.f32.mrf.mxu0
        %v534 = vadd.f32 0.0, %v533
        %535 = vdwg.mxu0
        %p536 = scmp.eq.s32.totalorder %s25, 0
        // Predicated region
        $region57: #{tpu_custom_call.1} parent=55 // pred_check
          %p537 = pneg %p536
        $region58: #{tpu_custom_call.1} parent=55 // pred_check_branch
          %539 = sbr.rel (%p537) target = $region60
        $region59: #{tpu_custom_call.1} parent=55 // pred_region
          %p540 = scmp.eq.s32.totalorder %s26, 0
          // Predicated region
          $region61: #{tpu_custom_call.1} parent=59 // pred_check
            %p541 = pneg %p540
          $region62: #{tpu_custom_call.1} parent=59 // pred_check_branch
            %543 = sbr.rel (%p541) target = $region64
          $region63: #{tpu_custom_call.1} parent=59 // pred_region
            %vm544 = vcmask 15360
            %545 = vst.msk [vmem:[#allocation2] sm:$0xff] %vm544, 0.0
            %546 = vst.msk [vmem:[#allocation2 + $0x8] sm:$0xff] %vm544, 0.0
          $region64: #{tpu_custom_call.1} parent=59 // pred_fallthru
            _
          %v547 = vld [vmem:[%s7] sm:$0xff]
          %v548 = vld [vmem:[%s7 + $0x8] sm:$0xff]
          %v549 = vld [vmem:[%s7 + $0x10] sm:$0xff]
          %v550 = vld [vmem:[%s7 + $0x18] sm:$0xff]
          %v551 = vld [vmem:[%s7 + $0x20] sm:$0xff]
          %v552 = vld [vmem:[%s7 + $0x28] sm:$0xff]
          %v553 = vld [vmem:[%s7 + $0x30] sm:$0xff]
          %v554 = vld [vmem:[%s7 + $0x38] sm:$0xff]
          %v555 = vld [vmem:[%s7 + $0x40] sm:$0xff]
          %v556 = vld [vmem:[%s7 + $0x48] sm:$0xff]
          %v557 = vld [vmem:[%s7 + $0x50] sm:$0xff]
          %v558 = vld [vmem:[%s7 + $0x58] sm:$0xff]
          %v559 = vld [vmem:[%s7 + $0x60] sm:$0xff]
          %v560 = vld [vmem:[%s7 + $0x68] sm:$0xff]
          %v561 = vld [vmem:[%s7 + $0x70] sm:$0xff]
          %v562 = vld [vmem:[%s7 + $0x78] sm:$0xff]
          %v563 = vld [vmem:[%s7 + $0x80] sm:$0xff]
          %v564 = vld [vmem:[%s7 + $0x88] sm:$0xff]
          %v565 = vld [vmem:[%s7 + $0x90] sm:$0xff]
          %v566 = vld [vmem:[%s7 + $0x98] sm:$0xff]
          %v567 = vld [vmem:[%s7 + $0xa0] sm:$0xff]
          %v568 = vld [vmem:[%s7 + $0xa8] sm:$0xff]
          %v569 = vld [vmem:[%s7 + $0xb0] sm:$0xff]
          %v570 = vld [vmem:[%s7 + $0xb8] sm:$0xff]
          %v571 = vld [vmem:[%s7 + $0xc0] sm:$0xff]
          %v572 = vld [vmem:[%s7 + $0xc8] sm:$0xff]
          %v573 = vld [vmem:[%s7 + $0xd0] sm:$0xff]
          %v574 = vld [vmem:[%s7 + $0xd8] sm:$0xff]
          %v575 = vld [vmem:[%s7 + $0xe0] sm:$0xff]
          %v576 = vld [vmem:[%s7 + $0xe8] sm:$0xff]
          %v577 = vld [vmem:[%s7 + $0xf0] sm:$0xff]
          %v578 = vld [vmem:[%s7 + $0xf8] sm:$0xff]
          %v579 = vld [vmem:[%s7 + $0x100] sm:$0xff]
          %v580 = vld [vmem:[%s7 + $0x108] sm:$0xff]
          %v581 = vld [vmem:[%s7 + $0x110] sm:$0xff]
          %v582 = vld [vmem:[%s7 + $0x118] sm:$0xff]
          %v583 = vld [vmem:[%s7 + $0x120] sm:$0xff]
          %v584 = vld [vmem:[%s7 + $0x128] sm:$0xff]
          %v585 = vld [vmem:[%s7 + $0x130] sm:$0xff]
          %v586 = vld [vmem:[%s7 + $0x138] sm:$0xff]
          %v587 = vld [vmem:[%s7 + $0x140] sm:$0xff]
          %v588 = vld [vmem:[%s7 + $0x148] sm:$0xff]
          %v589 = vld [vmem:[%s7 + $0x150] sm:$0xff]
          %v590 = vld [vmem:[%s7 + $0x158] sm:$0xff]
          %v591 = vld [vmem:[%s7 + $0x160] sm:$0xff]
          %v592 = vld [vmem:[%s7 + $0x168] sm:$0xff]
          %v593 = vld [vmem:[%s7 + $0x170] sm:$0xff]
          %v594 = vld [vmem:[%s7 + $0x178] sm:$0xff]
          %v595 = vld [vmem:[%s7 + $0x180] sm:$0xff]
          %v596 = vld [vmem:[%s7 + $0x188] sm:$0xff]
          %v597 = vld [vmem:[%s7 + $0x190] sm:$0xff]
          %v598 = vld [vmem:[%s7 + $0x198] sm:$0xff]
          %v599 = vld [vmem:[%s7 + $0x1a0] sm:$0xff]
          %v600 = vld [vmem:[%s7 + $0x1a8] sm:$0xff]
          %v601 = vld [vmem:[%s7 + $0x1b0] sm:$0xff]
          %v602 = vld [vmem:[%s7 + $0x1b8] sm:$0xff]
          %v603 = vld [vmem:[%s7 + $0x1c0] sm:$0xff]
          %v604 = vld [vmem:[%s7 + $0x1c8] sm:$0xff]
          %v605 = vld [vmem:[%s7 + $0x1d0] sm:$0xff]
          %v606 = vld [vmem:[%s7 + $0x1d8] sm:$0xff]
          %v607 = vld [vmem:[%s7 + $0x1e0] sm:$0xff]
          %v608 = vld [vmem:[%s7 + $0x1e8] sm:$0xff]
          %v609 = vld [vmem:[%s7 + $0x1f0] sm:$0xff]
          %v610 = vld [vmem:[%s7 + $0x1f8] sm:$0xff]
          %611 = vmatpush.msra.mxu0 %v562
          %612 = vmatpush.msra.mxu0 %v561
          %613 = vmatpush.msra.mxu0 %v560
          %614 = vmatpush.msra.mxu0 %v559
          %615 = vmatpush.msra.mxu0 %v558
          %616 = vmatpush.msra.mxu0 %v557
          %617 = vmatpush.msra.mxu0 %v556
          %618 = vmatpush.msra.mxu0 %v555
          %619 = vmatpush.msra.mxu0 %v554
          %620 = vmatpush.msra.mxu0 %v553
          %621 = vmatpush.msra.mxu0 %v552
          %622 = vmatpush.msra.mxu0 %v551
          %623 = vmatpush.msra.mxu0 %v550
          %624 = vmatpush.msra.mxu0 %v549
          %625 = vmatpush.msra.mxu0 %v548
          %626 = vmatpush.msra.mxu0 %v547
          %627 = vmatmul.f32.gmra.mxu0 %v462
          %v628 = vpop.f32.mrf.mxu0
          %v629 = vadd.f32 0.0, %v628
          %630 = vmatmul.f32.gmra.mxu0 %v465
          %v631 = vpop.f32.mrf.mxu0
          %v632 = vadd.f32 0.0, %v631
          %633 = vdwg.mxu0
          %634 = vmatpush.msra.mxu0 %v578
          %635 = vmatpush.msra.mxu0 %v577
          %636 = vmatpush.msra.mxu0 %v576
          %637 = vmatpush.msra.mxu0 %v575
          %638 = vmatpush.msra.mxu0 %v574
          %639 = vmatpush.msra.mxu0 %v573
          %640 = vmatpush.msra.mxu0 %v572
          %641 = vmatpush.msra.mxu0 %v571
          %642 = vmatpush.msra.mxu0 %v570
          %643 = vmatpush.msra.mxu0 %v569
          %644 = vmatpush.msra.mxu0 %v568
          %645 = vmatpush.msra.mxu0 %v567
          %646 = vmatpush.msra.mxu0 %v566
          %647 = vmatpush.msra.mxu0 %v565
          %648 = vmatpush.msra.mxu0 %v564
          %649 = vmatpush.msra.mxu0 %v563
          %650 = vmatmul.f32.gmra.mxu0 %v485
          %v651 = vpop.f32.mrf.mxu0
          %v652 = vadd.f32 %v629, %v651
          %653 = vmatmul.f32.gmra.mxu0 %v488
          %v654 = vpop.f32.mrf.mxu0
          %v655 = vadd.f32 %v632, %v654
          %656 = vdwg.mxu0
          %657 = vmatpush.msra.mxu0 %v594
          %658 = vmatpush.msra.mxu0 %v593
          %659 = vmatpush.msra.mxu0 %v592
          %660 = vmatpush.msra.mxu0 %v591
          %661 = vmatpush.msra.mxu0 %v590
          %662 = vmatpush.msra.mxu0 %v589
          %663 = vmatpush.msra.mxu0 %v588
          %664 = vmatpush.msra.mxu0 %v587
          %665 = vmatpush.msra.mxu0 %v586
          %666 = vmatpush.msra.mxu0 %v585
          %667 = vmatpush.msra.mxu0 %v584
          %668 = vmatpush.msra.mxu0 %v583
          %669 = vmatpush.msra.mxu0 %v582
          %670 = vmatpush.msra.mxu0 %v581
          %671 = vmatpush.msra.mxu0 %v580
          %672 = vmatpush.msra.mxu0 %v579
          %673 = vmatmul.f32.gmra.mxu0 %v508
          %v674 = vpop.f32.mrf.mxu0
          %v675 = vadd.f32 %v652, %v674
          %676 = vmatmul.f32.gmra.mxu0 %v511
          %v677 = vpop.f32.mrf.mxu0
          %v678 = vadd.f32 %v655, %v677
          %679 = vdwg.mxu0
          %680 = vmatpush.msra.mxu0 %v610
          %681 = vmatpush.msra.mxu0 %v609
          %682 = vmatpush.msra.mxu0 %v608
          %683 = vmatpush.msra.mxu0 %v607
          %684 = vmatpush.msra.mxu0 %v606
          %685 = vmatpush.msra.mxu0 %v605
          %686 = vmatpush.msra.mxu0 %v604
          %687 = vmatpush.msra.mxu0 %v603
          %688 = vmatpush.msra.mxu0 %v602
          %689 = vmatpush.msra.mxu0 %v601
          %690 = vmatpush.msra.mxu0 %v600
          %691 = vmatpush.msra.mxu0 %v599
          %692 = vmatpush.msra.mxu0 %v598
          %693 = vmatpush.msra.mxu0 %v597
          %694 = vmatpush.msra.mxu0 %v596
          %695 = vmatpush.msra.mxu0 %v595
          %696 = vmatmul.f32.gmra.mxu0 %v531
          %v697 = vpop.f32.mrf.mxu0
          %v698 = vadd.f32 %v675, %v697
          %699 = vmatmul.f32.gmra.mxu0 %v534
          %v700 = vpop.f32.mrf.mxu0
          %v701 = vadd.f32 %v678, %v700
          %702 = vdwg.mxu0
          %v703 = vmul.f32 %v462, %v462
          %v704 = vmul.f32 %v485, %v485
          %v705 = vmul.f32 %v508, %v508
          %v706 = vmul.f32 %v531, %v531
          %v707 = vmul.f32 %v465, %v465
          %v708 = vmul.f32 %v488, %v488
          %v709 = vmul.f32 %v511, %v511
          %v710 = vmul.f32 %v534, %v534
          %711 = vmatpush.msra.mxu0 %v562
          %712 = vmatpush.msra.mxu0 %v561
          %713 = vmatpush.msra.mxu0 %v560
          %714 = vmatpush.msra.mxu0 %v559
          %715 = vmatpush.msra.mxu0 %v558
          %716 = vmatpush.msra.mxu0 %v557
          %717 = vmatpush.msra.mxu0 %v556
          %718 = vmatpush.msra.mxu0 %v555
          %719 = vmatpush.msra.mxu0 %v554
          %720 = vmatpush.msra.mxu0 %v553
          %721 = vmatpush.msra.mxu0 %v552
          %722 = vmatpush.msra.mxu0 %v551
          %723 = vmatpush.msra.mxu0 %v550
          %724 = vmatpush.msra.mxu0 %v549
          %725 = vmatpush.msra.mxu0 %v548
          %726 = vmatpush.msra.mxu0 %v547
          %727 = vmatmul.f32.gmra.mxu0 %v703
          %v728 = vpop.f32.mrf.mxu0
          %v729 = vadd.f32 0.0, %v728
          %730 = vmatmul.f32.gmra.mxu0 %v707
          %v731 = vpop.f32.mrf.mxu0
          %v732 = vadd.f32 0.0, %v731
          %733 = vdwg.mxu0
          %734 = vmatpush.msra.mxu0 %v578
          %735 = vmatpush.msra.mxu0 %v577
          %736 = vmatpush.msra.mxu0 %v576
          %737 = vmatpush.msra.mxu0 %v575
          %738 = vmatpush.msra.mxu0 %v574
          %739 = vmatpush.msra.mxu0 %v573
          %740 = vmatpush.msra.mxu0 %v572
          %741 = vmatpush.msra.mxu0 %v571
          %742 = vmatpush.msra.mxu0 %v570
          %743 = vmatpush.msra.mxu0 %v569
          %744 = vmatpush.msra.mxu0 %v568
          %745 = vmatpush.msra.mxu0 %v567
          %746 = vmatpush.msra.mxu0 %v566
          %747 = vmatpush.msra.mxu0 %v565
          %748 = vmatpush.msra.mxu0 %v564
          %749 = vmatpush.msra.mxu0 %v563
          %750 = vmatmul.f32.gmra.mxu0 %v704
          %v751 = vpop.f32.mrf.mxu0
          %v752 = vadd.f32 %v729, %v751
          %753 = vmatmul.f32.gmra.mxu0 %v708
          %v754 = vpop.f32.mrf.mxu0
          %v755 = vadd.f32 %v732, %v754
          %756 = vdwg.mxu0
          %757 = vmatpush.msra.mxu0 %v594
          %758 = vmatpush.msra.mxu0 %v593
          %759 = vmatpush.msra.mxu0 %v592
          %760 = vmatpush.msra.mxu0 %v591
          %761 = vmatpush.msra.mxu0 %v590
          %762 = vmatpush.msra.mxu0 %v589
          %763 = vmatpush.msra.mxu0 %v588
          %764 = vmatpush.msra.mxu0 %v587
          %765 = vmatpush.msra.mxu0 %v586
          %766 = vmatpush.msra.mxu0 %v585
          %767 = vmatpush.msra.mxu0 %v584
          %768 = vmatpush.msra.mxu0 %v583
          %769 = vmatpush.msra.mxu0 %v582
          %770 = vmatpush.msra.mxu0 %v581
          %771 = vmatpush.msra.mxu0 %v580
          %772 = vmatpush.msra.mxu0 %v579
          %773 = vmatmul.f32.gmra.mxu0 %v705
          %v774 = vpop.f32.mrf.mxu0
          %v775 = vadd.f32 %v752, %v774
          %776 = vmatmul.f32.gmra.mxu0 %v709
          %v777 = vpop.f32.mrf.mxu0
          %v778 = vadd.f32 %v755, %v777
          %779 = vdwg.mxu0
          %780 = vmatpush.msra.mxu0 %v610
          %781 = vmatpush.msra.mxu0 %v609
          %782 = vmatpush.msra.mxu0 %v608
          %783 = vmatpush.msra.mxu0 %v607
          %784 = vmatpush.msra.mxu0 %v606
          %785 = vmatpush.msra.mxu0 %v605
          %786 = vmatpush.msra.mxu0 %v604
          %787 = vmatpush.msra.mxu0 %v603
          %788 = vmatpush.msra.mxu0 %v602
          %789 = vmatpush.msra.mxu0 %v601
          %790 = vmatpush.msra.mxu0 %v600
          %791 = vmatpush.msra.mxu0 %v599
          %792 = vmatpush.msra.mxu0 %v598
          %793 = vmatpush.msra.mxu0 %v597
          %794 = vmatpush.msra.mxu0 %v596
          %795 = vmatpush.msra.mxu0 %v595
          %796 = vmatmul.f32.gmra.mxu0 %v706
          %v797 = vpop.f32.mrf.mxu0
          %v798 = vadd.f32 %v775, %v797
          %799 = vmatmul.f32.gmra.mxu0 %v710
          %v800 = vpop.f32.mrf.mxu0
          %v801 = vadd.f32 %v778, %v800
          %802 = vdwg.mxu0
          %v803 = vld [vmem:[#allocation2] sm:$0xff]
          %v804 = vld [vmem:[#allocation2 + $0x8] sm:$0xff]
          %v805 = vadd.f32 %v803, %v698
          %v806 = vadd.f32 %v804, %v701
          %vm807 = vcmask 7168
          %808 = vst.msk [vmem:[#allocation2] sm:$0xff] %vm807, %v805
          %809 = vst.msk [vmem:[#allocation2 + $0x8] sm:$0xff] %vm807, %v806
          %v810 = vld [vmem:[#allocation2] sm:$0xff]
          %v811 = vld [vmem:[#allocation2 + $0x8] sm:$0xff]
          %814 = vrot.lane.b32.xlu0 %v798, 1
          %v815 = vpop.permute.xlu0 %814
          %816 = vrot.lane.b32.xlu0 %v801, 1
          %v817 = vpop.permute.xlu0 %816
          %v820 = vadd.f32 %v810, %v815
          %v821 = vadd.f32 %v811, %v817
          %vm822 = vcmask 15368
          %823 = vst.msk [vmem:[#allocation2] sm:$0xff] %vm822, %v820
          %824 = vst.msk [vmem:[#allocation2 + $0x8] sm:$0xff] %vm822, %v821
          // Predicated region
          $region65: #{tpu_custom_call.1} parent=59 // pred_check
            %p825 = pneg %p540
          $region66: #{tpu_custom_call.1} parent=59 // pred_check_branch
            %827 = sbr.rel (%p825) target = $region68
          $region67: #{tpu_custom_call.1} parent=59 // pred_region
            %v828 = vld [vmem:[#allocation2] sm:$0xff]
            %v829 = vld [vmem:[#allocation2 + $0x8] sm:$0xff]
            %v830 = vld [vmem:[%s8] sm:$0xff]
            %v831 = vld [vmem:[%s8 + $0x8] sm:$0xff]
            %v832 = vsub.f32 %v828, %v830
            %v833 = vsub.f32 %v829, %v831
            %v834 = vmul.f32 %v832, 0.001953125
            %v835 = vmul.f32 %v833, 0.001953125
            %v836 = vmul.f32 %v834, %v834
            %v837 = vmul.f32 %v835, %v835
            %840 = vrot.lane.b32.xlu0 %v836, 1
            %v841 = vpop.permute.xlu0 %840
            %842 = vrot.lane.b32.xlu0 %v837, 1
            %v843 = vpop.permute.xlu0 %842
            %v846 = vsub.f32 %v834, %v841
            %v847 = vsub.f32 %v835, %v843
            %v848 = vld [vmem:[%s4] sm:$0xff]
            %v849 = vld [vmem:[%s4 + $0x8] sm:$0xff]
            %v850 = vadd.f32 %v846, 1e-05
            %v851 = vadd.f32 %v847, 1e-05
            %v852 = vrsqrt.pop %v850
            %v853 = vmul.f32 %v852, %v850
            %v854 = vmul.f32 %v853, %v852
            %v855 = vmul.f32 0.5, %v854
            %v856 = vsub.f32 1.5, %v855
            %v857 = vmul.f32 %v852, %v856
            %vm858 = vweird.f32 %v850
            %vm859 = vweird.f32 %v852
            %vm860 = vmor %vm858, %vm859
            %v861 = vsel %vm860, %v852, %v857
            %v862 = vrsqrt.pop %v851
            %v863 = vmul.f32 %v862, %v851
            %v864 = vmul.f32 %v863, %v862
            %v865 = vmul.f32 0.5, %v864
            %v866 = vsub.f32 1.5, %v865
            %v867 = vmul.f32 %v862, %v866
            %vm868 = vweird.f32 %v851
            %vm869 = vweird.f32 %v862
            %vm870 = vmor %vm868, %vm869
            %v871 = vsel %vm870, %v862, %v867
            %874 = vrot.lane.b32.xlu0 %v861, 127
            %v875 = vpop.permute.xlu0 %874
            %876 = vrot.lane.b32.xlu0 %v871, 127
            %v877 = vpop.permute.xlu0 %876
            %v880 = vmul.f32 %v848, %v875
            %v881 = vmul.f32 %v849, %v877
            %882 = vst.msk [vmem:[#allocation3] sm:$0xff] %vm807, %v880
            %883 = vst.msk [vmem:[#allocation3 + $0x8] sm:$0xff] %vm807, %v881
            %v884 = vld [vmem:[%s5] sm:$0xff]
            %v885 = vld [vmem:[%s5 + $0x8] sm:$0xff]
            %v886 = vmul.f32 %v834, %v880
            %v887 = vmul.f32 %v835, %v881
            %v888 = vsub.f32 %v884, %v886
            %v889 = vsub.f32 %v885, %v887
            %892 = vrot.lane.b32.xlu0 %v888, 1
            %v893 = vpop.permute.xlu0 %892
            %894 = vrot.lane.b32.xlu0 %v889, 1
            %v895 = vpop.permute.xlu0 %894
            %898 = vst.msk [vmem:[#allocation3] sm:$0xff] %vm822, %v893
            %899 = vst.msk [vmem:[#allocation3 + $0x8] sm:$0xff] %vm822, %v895
          $region68: #{tpu_custom_call.1} parent=59 // pred_fallthru
            _
        $region60: #{tpu_custom_call.1} parent=55 // pred_fallthru
          _
        %p900 = scmp.eq.s32.totalorder %s25, 1
        // Predicated region
        $region69: #{tpu_custom_call.1} parent=55 // pred_check
          %p901 = pneg %p900
        $region70: #{tpu_custom_call.1} parent=55 // pred_check_branch
          %903 = sbr.rel (%p901) target = $region72
        $region71: #{tpu_custom_call.1} parent=55 // pred_region
          %v904 = vld [vmem:[#allocation3] sm:$0xff]
          %v905 = vld [vmem:[#allocation3 + $0x8] sm:$0xff]
          %907 = vset.pattern.permute.xlu0 0
          %908 = vperm.xlu0 %907, %v904
          %v909 = vpop.permute.xlu0 %908
          %912 = vset.pattern.permute.xlu0 0
          %913 = vperm.xlu0 %912, %v905
          %v914 = vpop.permute.xlu0 %913
          %v916 = vmul.f32 %v462, %v909
          %v917 = vmul.f32 %v485, %v909
          %v918 = vmul.f32 %v508, %v909
          %v919 = vmul.f32 %v531, %v909
          %v920 = vmul.f32 %v465, %v914
          %v921 = vmul.f32 %v488, %v914
          %v922 = vmul.f32 %v511, %v914
          %v923 = vmul.f32 %v534, %v914
          %924 = vset.pattern.permute.xlu0 1
          %925 = vperm.xlu0 %924, %v904
          %v926 = vpop.permute.xlu0 %925
          %928 = vset.pattern.permute.xlu0 1
          %929 = vperm.xlu0 %928, %v905
          %v930 = vpop.permute.xlu0 %929
          %v932 = vadd.f32 %v916, %v926
          %v933 = vadd.f32 %v917, %v926
          %v934 = vadd.f32 %v918, %v926
          %v935 = vadd.f32 %v919, %v926
          %v936 = vadd.f32 %v920, %v930
          %v937 = vadd.f32 %v921, %v930
          %v938 = vadd.f32 %v922, %v930
          %v939 = vadd.f32 %v923, %v930
          %v940 = vmul.f32 %v932, 0.2
          %v941 = vmul.f32 %v933, 0.2
          %v942 = vmul.f32 %v934, 0.2
          %v943 = vmul.f32 %v935, 0.2
          %v944 = vmul.f32 %v936, 0.2
          %v945 = vmul.f32 %v937, 0.2
          %v946 = vmul.f32 %v938, 0.2
          %v947 = vmul.f32 %v939, 0.2
          %v948 = vmax.f32 %v932, %v940
          %v949 = vmax.f32 %v933, %v941
          %v950 = vmax.f32 %v934, %v942
          %v951 = vmax.f32 %v935, %v943
          %v952 = vmax.f32 %v936, %v944
          %v953 = vmax.f32 %v937, %v945
          %v954 = vmax.f32 %v938, %v946
          %v955 = vmax.f32 %v939, %v947
          %v956 = vld [vmem:[%s6] sm:$0xff]
          %vm957 = vcmask 130048
          %v959 = vsel %vm957, %v956, 0
          %961 = vmatpush.msra.mxu0 0.0
          %962 = vmatpush.msra.mxu0 0.0
          %963 = vmatpush.msra.mxu0 0.0
          %964 = vmatpush.msra.mxu0 0.0
          %965 = vmatpush.msra.mxu0 0.0
          %966 = vmatpush.msra.mxu0 0.0
          %967 = vmatpush.msra.mxu0 0.0
          %968 = vmatpush.msra.mxu0 0.0
          %969 = vmatpush.msra.mxu0 0.0
          %970 = vmatpush.msra.mxu0 0.0
          %971 = vmatpush.msra.mxu0 0.0
          %972 = vmatpush.msra.mxu0 0.0
          %973 = vmatpush.msra.mxu0 0.0
          %974 = vmatpush.msra.mxu0 0.0
          %975 = vmatpush.msra.mxu0 %v952
          %976 = vmatpush.msra.mxu0 %v948
          %977 = vmatmul.f32.gmra.mxu0 %v959
          %v978 = vpop.f32.mrf.mxu0
          %v979 = vadd.f32 0.0, %v978
          %980 = vdwg.mxu0
          %981 = vmatpush.msra.mxu0 0.0
          %982 = vmatpush.msra.mxu0 0.0
          %983 = vmatpush.msra.mxu0 0.0
          %984 = vmatpush.msra.mxu0 0.0
          %985 = vmatpush.msra.mxu0 0.0
          %986 = vmatpush.msra.mxu0 0.0
          %987 = vmatpush.msra.mxu0 0.0
          %988 = vmatpush.msra.mxu0 0.0
          %989 = vmatpush.msra.mxu0 0.0
          %990 = vmatpush.msra.mxu0 0.0
          %991 = vmatpush.msra.mxu0 0.0
          %992 = vmatpush.msra.mxu0 0.0
          %993 = vmatpush.msra.mxu0 0.0
          %994 = vmatpush.msra.mxu0 0.0
          %995 = vmatpush.msra.mxu0 %v953
          %996 = vmatpush.msra.mxu0 %v949
          %997 = vmatmul.f32.gmra.mxu0 %v959
          %v998 = vpop.f32.mrf.mxu0
          %v999 = vadd.f32 0.0, %v998
          %1000 = vdwg.mxu0
          %1001 = vmatpush.msra.mxu0 0.0
          %1002 = vmatpush.msra.mxu0 0.0
          %1003 = vmatpush.msra.mxu0 0.0
          %1004 = vmatpush.msra.mxu0 0.0
          %1005 = vmatpush.msra.mxu0 0.0
          %1006 = vmatpush.msra.mxu0 0.0
          %1007 = vmatpush.msra.mxu0 0.0
          %1008 = vmatpush.msra.mxu0 0.0
          %1009 = vmatpush.msra.mxu0 0.0
          %1010 = vmatpush.msra.mxu0 0.0
          %1011 = vmatpush.msra.mxu0 0.0
          %1012 = vmatpush.msra.mxu0 0.0
          %1013 = vmatpush.msra.mxu0 0.0
          %1014 = vmatpush.msra.mxu0 0.0
          %1015 = vmatpush.msra.mxu0 %v954
          %1016 = vmatpush.msra.mxu0 %v950
          %1017 = vmatmul.f32.gmra.mxu0 %v959
          %v1018 = vpop.f32.mrf.mxu0
          %v1019 = vadd.f32 0.0, %v1018
          %1020 = vdwg.mxu0
          %1021 = vmatpush.msra.mxu0 0.0
          %1022 = vmatpush.msra.mxu0 0.0
          %1023 = vmatpush.msra.mxu0 0.0
          %1024 = vmatpush.msra.mxu0 0.0
          %1025 = vmatpush.msra.mxu0 0.0
          %1026 = vmatpush.msra.mxu0 0.0
          %1027 = vmatpush.msra.mxu0 0.0
          %1028 = vmatpush.msra.mxu0 0.0
          %1029 = vmatpush.msra.mxu0 0.0
          %1030 = vmatpush.msra.mxu0 0.0
          %1031 = vmatpush.msra.mxu0 0.0
          %1032 = vmatpush.msra.mxu0 0.0
          %1033 = vmatpush.msra.mxu0 0.0
          %1034 = vmatpush.msra.mxu0 0.0
          %1035 = vmatpush.msra.mxu0 %v955
          %1036 = vmatpush.msra.mxu0 %v951
          %1037 = vmatmul.f32.gmra.mxu0 %v959
          %v1038 = vpop.f32.mrf.mxu0
          %v1039 = vadd.f32 0.0, %v1038
          %1040 = vdwg.mxu0
          %v1045 = vrot.slane %v999, 7
          %v1046 = vrot.slane %v1019, 6
          %v1047 = vrot.slane %v1039, 5
          %vm1048 = vcmask 1040384
          %v1049 = vsel %vm1048, %v979, %v1045
          %vm1050 = vcmask 1042434
          %v1051 = vsel %vm1050, %v1046, %v1047
          %vm1052 = vcmask 1041408
          %v1053 = vsel %vm1052, %v1049, %v1051
          %s1055 = scalar_lea.vmem [#allocation4], %s312
          %v1056 = vlaneseq
          %vm1057 = vcmp.ge.s32.totalorder %v1056, 0
          %vm1058 = vcmp.lt.s32.totalorder %v1056, 512
          %vm1059 = vmand %vm1057, %vm1058
          %1060 = vst.msk [vmem:[%s1055] sm:$0xf] %vm1059, %v1053
        $region72: #{tpu_custom_call.1} parent=55 // pred_fallthru
          _
        // Predicated region
        $region73: #{tpu_custom_call.1} parent=55 // pred_check
          %p1061 = pneg %p235
        $region74: #{tpu_custom_call.1} parent=55 // pred_check_branch
          %1063 = sbr.rel (%p1061) target = $region76
        $region75: #{tpu_custom_call.1} parent=55 // pred_region
          %1065 = vsyncadd [#allocation5], 0
          %s1067 = sshll.u32 [#allocation4], 4
          %s1068 = int_to_ptr.vmem [resolvable:$true] %s1067
          %s1069 = sshll.u32 %s9, 4
          %s1070 = int_to_ptr.hbm [resolvable:$true] %s1069
          %1072 = dma.vmem_to_hbm [thread:$0]  %s1068, 64, %s1070, [#allocation5]
        $region76: #{tpu_custom_call.1} parent=55 // pred_fallthru
          _
        // Predicated region
        $region77: #{tpu_custom_call.1} parent=55 // pred_check
          %p1073 = pneg %p235
        $region78: #{tpu_custom_call.1} parent=55 // pred_check_branch
          %1075 = sbr.rel (%p1073) target = $region80
        $region79: #{tpu_custom_call.1} parent=55 // pred_region
          %1077 = dma.done [#allocation5], 64
        $region80: #{tpu_custom_call.1} parent=55 // pred_fallthru
          _
      $region56: #{tpu_custom_call.1} parent=5 // pred_fallthru
        _
      %p1078 = scmp.le.s32.totalorder 2, %s16
      // Predicated region
      $region81: #{tpu_custom_call.1} parent=5 // pred_check
        %p1079 = pneg %p1078
      $region82: #{tpu_custom_call.1} parent=5 // pred_check_branch
        %1081 = sbr.rel (%p1079) target = $region84
      $region83: #{tpu_custom_call.1} parent=5 // pred_region
        %s1082 = ssub.s32 %s16, 2
      $region84: #{tpu_custom_call.1} parent=5 // pred_fallthru
        _
    $region6: #{tpu_custom_call.1} parent=1 // loop_footer
      %s20 = sadd.s32 1, %s16
    $region7: #{tpu_custom_call.1} parent=1 // loop_footer_branch
      %15 = sbr.rel target = $region3
    $region8: #{tpu_custom_call.1} parent=1 // loop_exit
      _
    %1083 = vsyncpa [#allocation5], 1
    %s1084 = scalar_lea.sflag [#allocation5], 1
    %1085 = vsyncpa %s1084, 1

</llo_original>
